<compile_context>
chip_gen: v6e
topology: v6e:2x2x1
jax: 0.10.0
libtpu: 0.0.40
codegen_flags: <defaults>
</compile_context>

<pallas_src>
import jax
import jax.numpy as jnp
from jax.experimental import pallas as pl
from jax.experimental.pallas import tpu as pltpu


def _round_up(v: int, m: int) -> int:
    return ((v + m - 1) // m) * m


def _vmem_cap_bytes() -> int:
    """Per-generation VMEM budget cap (~80% of physical; 64 MiB fallback)."""
    phys = 64 * 1024 * 1024
    try:
        info = pltpu.get_tpu_info()
        phys = int(getattr(info, "vmem_capacity_bytes", phys)) or phys
    except Exception:
        pass
    return int(phys * 0.8)


def _select_batch_tiling(batch: int, max_tile: int):
    """Pick (tm, padded_batch).

    - tm % 16 == 0 when the batch allows (bf16 sublane packing), else % 8.
    - >= 2 grid steps for large batches so the 'parallel' axis can shard
      across v7x's two TensorCores.
    - Avoid padding the batch up by more than ~12.5% (pad waste).
    """
    if batch <= 16:
        bp = _round_up(batch, 8)          # single tile, 8-row sublane minimum
        return bp, bp
    max_tile = max(16, _round_up(max_tile, 16))
    b16 = _round_up(batch, 16)
    tm = min(max_tile, _round_up((b16 + 1) // 2, 16))   # aim for >= 2 steps
    while tm > 16 and (_round_up(b16, tm) - b16) * 8 > b16:
        tm = _round_up(tm // 2, 16)
    return tm, _round_up(b16, tm)


def _make_mlp_kernel(num_hidden: int, compute_dtype):
    """Fused eval MLP: num_hidden x (Linear + ReLU + BN affine) -> Linear."""

    def kernel(*refs):
        # refs = (x, [W, b, scale, shift] * num_hidden, W_out, b_out, out)
        x_ref = refs[0]
        out_ref = refs[-1]
        p = refs[1:-1]

        h = x_ref[...].astype(compute_dtype)          # f32 tile -> bf16 once
        for l in range(num_hidden):
            w_ref, b_ref, s_ref, t_ref = p[4 * l: 4 * l + 4]
            acc = jnp.dot(h, w_ref[...], preferred_element_type=jnp.float32)
            # f32 epilogue: bias + ReLU + BatchNorm1d (eval) affine; Dropout is
            # identity in eval mode.  Re-quantize the activation to bf16 so the
            # live inter-layer tensor is half-size.
            h = ((jnp.maximum(acc + b_ref[...], 0.0) * s_ref[...] + t_ref[...])
                 .astype(compute_dtype))
        w_ref, b_ref = p[4 * num_hidden], p[4 * num_hidden + 1]
        y = jnp.dot(h, w_ref[...], preferred_element_type=jnp.float32) + b_ref[...]
        out_ref[...] = y.astype(out_ref.dtype)

    return kernel


def pack_params(layer_params, input_dim, *, pad_to=128, compute_dtype=jnp.bfloat16):
    """Pad hidden feature dims to the lane width; cast weights to bf16.

    BN (eval) scale/shift are kept in f32 and applied in the kernel epilogue
    (never folded into bf16 weights).  The first layer keeps the raw input
    width (x is passed unpadded); the final layer keeps the raw output width.
    """
    hidden = []
    prev = input_dim
    for (w, b, scale, shift) in layer_params["hidden"]:
        din, dout = w.shape
        dout_p = _round_up(dout, pad_to)
        w_p = jnp.zeros((prev, dout_p), jnp.float32).at[:din, :dout].set(w)
        b_p = jnp.zeros((1, dout_p), jnp.float32).at[:, :dout].set(b)
        s_p = jnp.zeros((1, dout_p), jnp.float32).at[:, :dout].set(scale)
        t_p = jnp.zeros((1, dout_p), jnp.float32).at[:, :dout].set(shift)
        hidden.append((w_p.astype(compute_dtype), b_p, s_p, t_p))
        prev = dout_p
    w_out, b_out = layer_params["out"]
    din, dout = w_out.shape
    w_o = jnp.zeros((prev, dout), jnp.float32).at[:din, :].set(w_out)
    return {"hidden": hidden,
            "out": (w_o.astype(compute_dtype), b_out.astype(jnp.float32))}


def base_network_forward(x, packed, *, batch_tile=512, interpret=False):
    """Fused BaseNetwork eval-mode forward.

    Args:
      x:      (batch, input_dim) float32.
      packed: output of pack_params.
    Returns:
      (batch, output_dim) float32.
    """
    batch, in_dim = x.shape
    hidden = packed["hidden"]
    w_out, b_out = packed["out"]
    num_hidden = len(hidden)
    out_dim = w_out.shape[1]
    compute_dtype = w_out.dtype

    first_w_in = hidden[0][0].shape[0] if num_hidden else w_out.shape[0]
    assert first_w_in == in_dim, "packed params do not match input feature dim"

    tm, batch_p = _select_batch_tiling(batch, batch_tile)
    # Pad only the batch dim, and only when required; no feature pad / cast of
    # x in the wrapper (the cast happens inside the kernel).
    if batch_p != batch:
        x = jnp.pad(x, ((0, batch_p - batch), (0, 0)))

    resident = pl.Buffered(1)   # constant-index params: single VMEM buffer

    flat = [x]
    in_specs = [pl.BlockSpec((tm, in_dim), lambda i: (i, 0))]
    for (w, b, s, t) in hidden:
        for a in (w, b, s, t):
            flat.append(a)
            in_specs.append(pl.BlockSpec(a.shape, lambda i: (0, 0),
                                         pipeline_mode=resident))
    for a in (w_out, b_out):
        flat.append(a)
        in_specs.append(pl.BlockSpec(a.shape, lambda i: (0, 0),
                                     pipeline_mode=resident))
    out_spec = pl.BlockSpec((tm, out_dim), lambda i: (i, 0))

    # Cost estimate for the XLA scheduler.
    param_bytes = sum(a.size * a.dtype.itemsize for a in flat[1:])
    flops = 2 * batch_p * w_out.shape[0] * w_out.shape[1]
    for (w, _, _, _) in hidden:
        flops += 2 * batch_p * w.shape[0] * w.shape[1]
    bytes_accessed = (batch_p * in_dim * 4 + batch_p * out_dim * 4 + param_bytes)
    cost = pl.CostEstimate(flops=flops, transcendentals=0,
                           bytes_accessed=bytes_accessed)

    # VMEM budget: single-buffered resident params + double-buffered x/out
    # tiles + live activation (f32 accumulator + bf16 activation).
    max_pad = max([w.shape[1] for (w, _, _, _) in hidden]
                  + [w_out.shape[0], out_dim, in_dim])
    vmem_need = (param_bytes
                 + 2 * tm * in_dim * 4
                 + 2 * tm * out_dim * 4
                 + tm * max_pad * (4 + 2))
    cap = _vmem_cap_bytes()
    # TODO(synk): weight-streaming fallback (pltpu.emit_pipeline over layers or
    # manual double-buffered make_async_copy) when resident params exceed the
    # per-generation VMEM cap (matters for very wide layers on v7x's 64 MiB).
    vmem_limit = int(min(max(2 * vmem_need, 32 * 1024 * 1024), cap))

    kernel = _make_mlp_kernel(num_hidden, compute_dtype)

    out = pl.pallas_call(
        kernel,
        out_shape=jax.ShapeDtypeStruct((batch_p, out_dim), jnp.float32),
        grid=(batch_p // tm,),
        in_specs=in_specs,
        out_specs=out_spec,
        compiler_params=pltpu.CompilerParams(
            dimension_semantics=("parallel",),     # shard batch over TCs (v7x)
            vmem_limit_bytes=vmem_limit),
        cost_estimate=cost,
        interpret=interpret,
    )(*flat)

    return out[:batch]


def init_base_network_params(key, input_dim, hidden_dims, output_dim):
    """Synthetic init matching nn.Linear / nn.BatchNorm1d (eval) shapes.

    BN running stats / affine are non-trivial so the scale/shift epilogue path
    is actually exercised (not just gamma=1, beta=0, var=1).
    """
    params = {"hidden": [], "out": None}
    prev = input_dim
    eps = 1e-5
    for h in hidden_dims:
        key, kw, kb, kg, kbe, km, kv = jax.random.split(key, 7)
        bound = 1.0 / (prev ** 0.5)
        w = jax.random.uniform(kw, (prev, h), jnp.float32, -bound, bound)
        b = jax.random.uniform(kb, (1, h), jnp.float32, -bound, bound)
        gamma = jax.random.uniform(kg, (1, h), jnp.float32, 0.5, 1.5)
        beta = 0.5 * jax.random.normal(kbe, (1, h), jnp.float32)
        running_mean = 0.5 * jax.random.normal(km, (1, h), jnp.float32)
        running_var = jax.random.uniform(kv, (1, h), jnp.float32, 0.25, 2.0)
        scale = gamma / jnp.sqrt(running_var + eps)
        shift = beta - running_mean * scale
        params["hidden"].append((w, b, scale, shift))
        prev = h
    key, kw, kb = jax.random.split(key, 3)
    bound = 1.0 / (prev ** 0.5)
    w_out = jax.random.uniform(kw, (prev, output_dim), jnp.float32, -bound, bound)
    b_out = jax.random.uniform(kb, (1, output_dim), jnp.float32, -bound, bound)
    params["out"] = (w_out, b_out)
    return params


def reference_forward(x, layer_params):
    """Pure-JAX f32 reference with the original op ordering."""
    h = x
    for (w, b, s, t) in layer_params["hidden"]:
        h = jnp.maximum(h @ w + b, 0.0)   # Linear -> ReLU
        h = h * s + t                     # BatchNorm1d (eval); Dropout = id
    w_out, b_out = layer_params["out"]
    return h @ w_out + b_out


if __name__ == "__main__":
    key = jax.random.PRNGKey(0)
    batch = 8
    input_dim = 16
    hidden_dims = [32, 32]
    output_dim = 4

    key, kx, kp = jax.random.split(key, 3)
    x = jax.random.normal(kx, (batch, input_dim), jnp.float32)
    params = init_base_network_params(kp, input_dim, hidden_dims, output_dim)

    packed = pack_params(params, input_dim, pad_to=128,
                         compute_dtype=jnp.bfloat16)

    out = base_network_forward(x, packed, output_dim and 4 or 4) if False else \
        base_network_forward(x, packed)
    out = jax.block_until_ready(out)

    ref = reference_forward(x, params)
    assert out.shape == (batch, output_dim), out.shape
    max_err = float(jnp.max(jnp.abs(out - ref)))
    # bf16 matmul operands / bf16 inter-layer activations (f32 accumulation).
    assert jnp.allclose(out, ref, atol=3e-2, rtol=3e-2), (
        f"mismatch vs reference, max abs err={max_err}")

    print("KERNEL_OK")
</pallas_src>

<mosaic_0001>
module attributes {stable_mosaic.version = 11 : i64} {
  func.func @kernel(%arg0: i32, %arg1: memref<8x16xf32, #tpu.memory_space<vmem>>, %arg2: memref<16x128xbf16, #tpu.memory_space<vmem>>, %arg3: memref<1x128xf32, #tpu.memory_space<vmem>>, %arg4: memref<1x128xf32, #tpu.memory_space<vmem>>, %arg5: memref<1x128xf32, #tpu.memory_space<vmem>>, %arg6: memref<128x128xbf16, #tpu.memory_space<vmem>>, %arg7: memref<1x128xf32, #tpu.memory_space<vmem>>, %arg8: memref<1x128xf32, #tpu.memory_space<vmem>>, %arg9: memref<1x128xf32, #tpu.memory_space<vmem>>, %arg10: memref<128x4xbf16, #tpu.memory_space<vmem>>, %arg11: memref<1x4xf32, #tpu.memory_space<vmem>>, %arg12: memref<8x4xf32, #tpu.memory_space<vmem>>) attributes {dimension_semantics = [#tpu.dimension_semantics<parallel>], iteration_bounds = array<i64: 1>, scalar_prefetch = 0 : i64, scratch_operands = 0 : i64, tpu.core_type = #tpu.core_type<tc>, window_params = [{transform_indices = @transform_0, window_bounds = array<i64: 8, 16>}, {pipeline_mode = #tpu.pipeline_mode<synchronous>, transform_indices = @transform_1, window_bounds = array<i64: 16, 128>}, {pipeline_mode = #tpu.pipeline_mode<synchronous>, transform_indices = @transform_2, window_bounds = array<i64: 1, 128>}, {pipeline_mode = #tpu.pipeline_mode<synchronous>, transform_indices = @transform_3, window_bounds = array<i64: 1, 128>}, {pipeline_mode = #tpu.pipeline_mode<synchronous>, transform_indices = @transform_4, window_bounds = array<i64: 1, 128>}, {pipeline_mode = #tpu.pipeline_mode<synchronous>, transform_indices = @transform_5, window_bounds = array<i64: 128, 128>}, {pipeline_mode = #tpu.pipeline_mode<synchronous>, transform_indices = @transform_6, window_bounds = array<i64: 1, 128>}, {pipeline_mode = #tpu.pipeline_mode<synchronous>, transform_indices = @transform_7, window_bounds = array<i64: 1, 128>}, {pipeline_mode = #tpu.pipeline_mode<synchronous>, transform_indices = @transform_8, window_bounds = array<i64: 1, 128>}, {pipeline_mode = #tpu.pipeline_mode<synchronous>, transform_indices = @transform_9, window_bounds = array<i64: 128, 4>}, {pipeline_mode = #tpu.pipeline_mode<synchronous>, transform_indices = @transform_10, window_bounds = array<i64: 1, 4>}, {transform_indices = @transform_11, window_bounds = array<i64: 8, 4>}]} {
    %c0 = arith.constant 0 : index
    %c0_0 = arith.constant 0 : index
    %0 = vector.load %arg1[%c0, %c0_0] : memref<8x16xf32, #tpu.memory_space<vmem>>, vector<8x16xf32>
    %1 = arith.truncf %0 : vector<8x16xf32> to vector<8x16xbf16>
    %c0_1 = arith.constant 0 : index
    %c0_2 = arith.constant 0 : index
    %2 = vector.load %arg2[%c0_1, %c0_2] : memref<16x128xbf16, #tpu.memory_space<vmem>>, vector<16x128xbf16>
    %cst = arith.constant dense<0.000000e+00> : vector<8x128xf32>
    %3 = tpu.matmul %1, %2, %cst {dimension_numbers = #tpu.dot_dimension_numbers<[1], [0], [0], [1], [0, 0, 1, 1], [], []>} : vector<8x16xbf16>, vector<16x128xbf16>, vector<8x128xf32> -> vector<8x128xf32>
    %c0_3 = arith.constant 0 : index
    %c0_4 = arith.constant 0 : index
    %4 = vector.load %arg3[%c0_3, %c0_4] : memref<1x128xf32, #tpu.memory_space<vmem>>, vector<1x128xf32>
    %5 = vector.broadcast %4 : vector<1x128xf32> to vector<8x128xf32>
    %6 = arith.addf %3, %5 : vector<8x128xf32>
    %cst_5 = arith.constant 0.000000e+00 : f32
    %7 = vector.broadcast %cst_5 : f32 to vector<8x128xf32>
    %8 = arith.maximumf %6, %7 : vector<8x128xf32>
    %c0_6 = arith.constant 0 : index
    %c0_7 = arith.constant 0 : index
    %9 = vector.load %arg4[%c0_6, %c0_7] : memref<1x128xf32, #tpu.memory_space<vmem>>, vector<1x128xf32>
    %10 = vector.broadcast %9 : vector<1x128xf32> to vector<8x128xf32>
    %11 = arith.mulf %8, %10 : vector<8x128xf32>
    %c0_8 = arith.constant 0 : index
    %c0_9 = arith.constant 0 : index
    %12 = vector.load %arg5[%c0_8, %c0_9] : memref<1x128xf32, #tpu.memory_space<vmem>>, vector<1x128xf32>
    %13 = vector.broadcast %12 : vector<1x128xf32> to vector<8x128xf32>
    %14 = arith.addf %11, %13 : vector<8x128xf32>
    %15 = arith.truncf %14 : vector<8x128xf32> to vector<8x128xbf16>
    %c0_10 = arith.constant 0 : index
    %c0_11 = arith.constant 0 : index
    %16 = vector.load %arg6[%c0_10, %c0_11] : memref<128x128xbf16, #tpu.memory_space<vmem>>, vector<128x128xbf16>
    %cst_12 = arith.constant dense<0.000000e+00> : vector<8x128xf32>
    %17 = tpu.matmul %15, %16, %cst_12 {dimension_numbers = #tpu.dot_dimension_numbers<[1], [0], [0], [1], [0, 0, 1, 1], [], []>} : vector<8x128xbf16>, vector<128x128xbf16>, vector<8x128xf32> -> vector<8x128xf32>
    %c0_13 = arith.constant 0 : index
    %c0_14 = arith.constant 0 : index
    %18 = vector.load %arg7[%c0_13, %c0_14] : memref<1x128xf32, #tpu.memory_space<vmem>>, vector<1x128xf32>
    %19 = vector.broadcast %18 : vector<1x128xf32> to vector<8x128xf32>
    %20 = arith.addf %17, %19 : vector<8x128xf32>
    %cst_15 = arith.constant 0.000000e+00 : f32
    %21 = vector.broadcast %cst_15 : f32 to vector<8x128xf32>
    %22 = arith.maximumf %20, %21 : vector<8x128xf32>
    %c0_16 = arith.constant 0 : index
    %c0_17 = arith.constant 0 : index
    %23 = vector.load %arg8[%c0_16, %c0_17] : memref<1x128xf32, #tpu.memory_space<vmem>>, vector<1x128xf32>
    %24 = vector.broadcast %23 : vector<1x128xf32> to vector<8x128xf32>
    %25 = arith.mulf %22, %24 : vector<8x128xf32>
    %c0_18 = arith.constant 0 : index
    %c0_19 = arith.constant 0 : index
    %26 = vector.load %arg9[%c0_18, %c0_19] : memref<1x128xf32, #tpu.memory_space<vmem>>, vector<1x128xf32>
    %27 = vector.broadcast %26 : vector<1x128xf32> to vector<8x128xf32>
    %28 = arith.addf %25, %27 : vector<8x128xf32>
    %29 = arith.truncf %28 : vector<8x128xf32> to vector<8x128xbf16>
    %c0_20 = arith.constant 0 : index
    %c0_21 = arith.constant 0 : index
    %30 = vector.load %arg10[%c0_20, %c0_21] : memref<128x4xbf16, #tpu.memory_space<vmem>>, vector<128x4xbf16>
    %cst_22 = arith.constant dense<0.000000e+00> : vector<8x4xf32>
    %31 = tpu.matmul %29, %30, %cst_22 {dimension_numbers = #tpu.dot_dimension_numbers<[1], [0], [0], [1], [0, 0, 1, 1], [], []>} : vector<8x128xbf16>, vector<128x4xbf16>, vector<8x4xf32> -> vector<8x4xf32>
    %c0_23 = arith.constant 0 : index
    %c0_24 = arith.constant 0 : index
    %32 = vector.load %arg11[%c0_23, %c0_24] : memref<1x4xf32, #tpu.memory_space<vmem>>, vector<1x4xf32>
    %33 = vector.broadcast %32 : vector<1x4xf32> to vector<8x4xf32>
    %34 = arith.addf %31, %33 : vector<8x4xf32>
    %c0_25 = arith.constant 0 : index
    %c0_26 = arith.constant 0 : index
    %35 = vector.load %arg12[%c0_25, %c0_26] : memref<8x4xf32, #tpu.memory_space<vmem>>, vector<8x4xf32>
    tpu.vector_store %arg12[%c0_25, %c0_26], %34 {strides = array<i32>} : memref<8x4xf32, #tpu.memory_space<vmem>>, vector<8x4xf32>,
    return
  }
  func.func @transform_0(%arg0: i32) -> (i32, i32) {
    %c0_i32 = arith.constant 0 : i32
    %c0_i32_0 = arith.constant 0 : i32
    return %arg0, %c0_i32 : i32, i32
  }
  func.func @transform_1(%arg0: i32) -> (i32, i32) {
    %c0_i32 = arith.constant 0 : i32
    %c0_i32_0 = arith.constant 0 : i32
    %c0_i32_1 = arith.constant 0 : i32
    return %c0_i32, %c0_i32_0 : i32, i32
  }
  func.func @transform_2(%arg0: i32) -> (i32, i32) {
    %c0_i32 = arith.constant 0 : i32
    %c0_i32_0 = arith.constant 0 : i32
    %c0_i32_1 = arith.constant 0 : i32
    return %c0_i32, %c0_i32_0 : i32, i32
  }
  func.func @transform_3(%arg0: i32) -> (i32, i32) {
    %c0_i32 = arith.constant 0 : i32
    %c0_i32_0 = arith.constant 0 : i32
    %c0_i32_1 = arith.constant 0 : i32
    return %c0_i32, %c0_i32_0 : i32, i32
  }
  func.func @transform_4(%arg0: i32) -> (i32, i32) {
    %c0_i32 = arith.constant 0 : i32
    %c0_i32_0 = arith.constant 0 : i32
    %c0_i32_1 = arith.constant 0 : i32
    return %c0_i32, %c0_i32_0 : i32, i32
  }
  func.func @transform_5(%arg0: i32) -> (i32, i32) {
    %c0_i32 = arith.constant 0 : i32
    %c0_i32_0 = arith.constant 0 : i32
    %c0_i32_1 = arith.constant 0 : i32
    return %c0_i32, %c0_i32_0 : i32, i32
  }
  func.func @transform_6(%arg0: i32) -> (i32, i32) {
    %c0_i32 = arith.constant 0 : i32
    %c0_i32_0 = arith.constant 0 : i32
    %c0_i32_1 = arith.constant 0 : i32
    return %c0_i32, %c0_i32_0 : i32, i32
  }
  func.func @transform_7(%arg0: i32) -> (i32, i32) {
    %c0_i32 = arith.constant 0 : i32
    %c0_i32_0 = arith.constant 0 : i32
    %c0_i32_1 = arith.constant 0 : i32
    return %c0_i32, %c0_i32_0 : i32, i32
  }
  func.func @transform_8(%arg0: i32) -> (i32, i32) {
    %c0_i32 = arith.constant 0 : i32
    %c0_i32_0 = arith.constant 0 : i32
    %c0_i32_1 = arith.constant 0 : i32
    return %c0_i32, %c0_i32_0 : i32, i32
  }
  func.func @transform_9(%arg0: i32) -> (i32, i32) {
    %c0_i32 = arith.constant 0 : i32
    %c0_i32_0 = arith.constant 0 : i32
    %c0_i32_1 = arith.constant 0 : i32
    return %c0_i32, %c0_i32_0 : i32, i32
  }
  func.func @transform_10(%arg0: i32) -> (i32, i32) {
    %c0_i32 = arith.constant 0 : i32
    %c0_i32_0 = arith.constant 0 : i32
    %c0_i32_1 = arith.constant 0 : i32
    return %c0_i32, %c0_i32_0 : i32, i32
  }
  func.func @transform_11(%arg0: i32) -> (i32, i32) {
    %c0_i32 = arith.constant 0 : i32
    %c0_i32_0 = arith.constant 0 : i32
    return %arg0, %c0_i32 : i32, i32
  }
}

</mosaic_0001>

<llo_original>
// kernel: tpu_custom_call.1
$region0: #{tpu_custom_call.1}
  #allocation0 [shape = 'u32[]', space=smem, size = 0x4, offset = 0x4, fixed_abs, tag = 'smem constant byte address 0x4 - core index']
  #allocation1 [shape = 'u32[144,128]{1,0:T(1,128)}', space=vmem, size = 0x12000, scoped, tag = 'internal scratch']
  %s0 = inlined_call_operand.vmem [shape: f32[8,16], index: 0, kind: input, shape index: {}]
  %s1 = inlined_call_operand.hbm [shape: bf16[16,128], index: 1, kind: input, shape index: {}]
  %s2 = inlined_call_operand.vmem [shape: f32[1,128], index: 2, kind: input, shape index: {}]
  %s3 = inlined_call_operand.vmem [shape: f32[1,128], index: 3, kind: input, shape index: {}]
  %s4 = inlined_call_operand.hbm [shape: f32[1,128], index: 4, kind: input, shape index: {}]
  %s5 = inlined_call_operand.vmem [shape: bf16[128,128], index: 5, kind: input, shape index: {}]
  %s6 = inlined_call_operand.hbm [shape: f32[1,128], index: 6, kind: input, shape index: {}]
  %s7 = inlined_call_operand.vmem [shape: f32[1,128], index: 7, kind: input, shape index: {}]
  %s8 = inlined_call_operand.vmem [shape: f32[1,128], index: 8, kind: input, shape index: {}]
  %s9 = inlined_call_operand.vmem [shape: bf16[128,4], index: 9, kind: input, shape index: {}]
  %s10 = inlined_call_operand.vmem [shape: f32[1,4], index: 10, kind: input, shape index: {}]
  %s11 = inlined_call_operand.vmem [shape: f32[8,4], index: 11, kind: output, shape index: {}]
  %s12 = sld [smem:[#allocation0]]
  $region66: #{tpu_custom_call.1} parent=0
    _
  %s14 = ssub.s32 1, %s12
  %s15 = scalar_select 0, %s14, %s12
  $region1: #{tpu_custom_call.1} parent=0
    #allocation2 [shape = 'u8[4096]{0}', space=vmem, size = 0x1000, scoped, tag = 'input window, operand 1, single buffered']
    #allocation3 [shape = 's32[1]{0}', space=sflag, size = 0x4, scoped, tag = 'scoped memory for tpu_custom_call.1']
    #allocation4 [shape = 'u8[512]{0}', space=vmem, size = 0x400, scoped, tag = 'input window, operand 4, single buffered']
    #allocation5 [shape = 's32[1]{0}', space=sflag, size = 0x4, scoped, tag = 'scoped memory for tpu_custom_call.1']
    #allocation6 [shape = 'u8[512]{0}', space=vmem, size = 0x400, scoped, tag = 'input window, operand 6, single buffered']
    %16 = vsyncpa [#allocation3], 0
    %17 = vsyncpa [#allocation5], 0
    // Predicated region
    $region2: #{tpu_custom_call.1} parent=1 // pred_check
      _
    $region3: #{tpu_custom_call.1} parent=1 // pred_check_branch
      %19 = sbr.rel (0) target = $region5
    $region4: #{tpu_custom_call.1} parent=1 // pred_region
      _
    $region5: #{tpu_custom_call.1} parent=1 // pred_fallthru
      _
    // Predicated region
    $region6: #{tpu_custom_call.1} parent=1 // pred_check
      _
    $region7: #{tpu_custom_call.1} parent=1 // pred_check_branch
      %21 = sbr.rel (0) target = $region9
    $region8: #{tpu_custom_call.1} parent=1 // pred_region
      %s23 = ssub.s32 128, 128
      %24 = vsyncadd [#allocation3], %s23
      %s25 = sshll.u32 [#allocation2], 4
      %s26 = int_to_ptr.vmem [resolvable:$true] %s25
      %31 = dma.hbm_to_vmem [thread:$0]  %s1, 128, %s26, [#allocation3], 64, 64, 4
    $region9: #{tpu_custom_call.1} parent=1 // pred_fallthru
      _
    // Predicated region
    $region10: #{tpu_custom_call.1} parent=1 // pred_check
      _
    $region11: #{tpu_custom_call.1} parent=1 // pred_check_branch
      %33 = sbr.rel (0) target = $region13
    $region12: #{tpu_custom_call.1} parent=1 // pred_region
      _
    $region13: #{tpu_custom_call.1} parent=1 // pred_fallthru
      _
    // Predicated region
    $region14: #{tpu_custom_call.1} parent=1 // pred_check
      _
    $region15: #{tpu_custom_call.1} parent=1 // pred_check_branch
      %35 = sbr.rel (0) target = $region17
    $region16: #{tpu_custom_call.1} parent=1 // pred_region
      _
    $region17: #{tpu_custom_call.1} parent=1 // pred_fallthru
      _
    // Predicated region
    $region18: #{tpu_custom_call.1} parent=1 // pred_check
      _
    $region19: #{tpu_custom_call.1} parent=1 // pred_check_branch
      %37 = sbr.rel (0) target = $region21
    $region20: #{tpu_custom_call.1} parent=1 // pred_region
      %s39 = ssub.s32 16, 16
      %40 = vsyncadd [#allocation5], %s39
      %s42 = sshll.u32 [#allocation4], 4
      %s43 = int_to_ptr.vmem [resolvable:$true] %s42
      %45 = dma.hbm_to_vmem [thread:$0]  %s4, 16, %s43, [#allocation5]
    $region21: #{tpu_custom_call.1} parent=1 // pred_fallthru
      _
    // Predicated region
    $region22: #{tpu_custom_call.1} parent=1 // pred_check
      _
    $region23: #{tpu_custom_call.1} parent=1 // pred_check_branch
      %47 = sbr.rel (0) target = $region25
    $region24: #{tpu_custom_call.1} parent=1 // pred_region
      _
    $region25: #{tpu_custom_call.1} parent=1 // pred_fallthru
      _
    // Predicated region
    $region26: #{tpu_custom_call.1} parent=1 // pred_check
      _
    $region27: #{tpu_custom_call.1} parent=1 // pred_check_branch
      %49 = sbr.rel (0) target = $region29
    $region28: #{tpu_custom_call.1} parent=1 // pred_region
      %s51 = ssub.s32 16, 16
      %52 = vsyncadd [#allocation5], %s51
      %s54 = sshll.u32 [#allocation6], 4
      %s55 = int_to_ptr.vmem [resolvable:$true] %s54
      %57 = dma.hbm_to_vmem [thread:$0]  %s6, 16, %s55, [#allocation5]
    $region29: #{tpu_custom_call.1} parent=1 // pred_fallthru
      _
    // Predicated region
    $region30: #{tpu_custom_call.1} parent=1 // pred_check
      _
    $region31: #{tpu_custom_call.1} parent=1 // pred_check_branch
      %59 = sbr.rel (0) target = $region33
    $region32: #{tpu_custom_call.1} parent=1 // pred_region
      _
    $region33: #{tpu_custom_call.1} parent=1 // pred_fallthru
      _
    // Predicated region
    $region34: #{tpu_custom_call.1} parent=1 // pred_check
      _
    $region35: #{tpu_custom_call.1} parent=1 // pred_check_branch
      %61 = sbr.rel (0) target = $region37
    $region36: #{tpu_custom_call.1} parent=1 // pred_region
      _
    $region37: #{tpu_custom_call.1} parent=1 // pred_fallthru
      _
    // Predicated region
    $region38: #{tpu_custom_call.1} parent=1 // pred_check
      _
    $region39: #{tpu_custom_call.1} parent=1 // pred_check_branch
      %63 = sbr.rel (0) target = $region41
    $region40: #{tpu_custom_call.1} parent=1 // pred_region
      _
    $region41: #{tpu_custom_call.1} parent=1 // pred_fallthru
      _
    // Predicated region
    $region42: #{tpu_custom_call.1} parent=1 // pred_check
      _
    $region43: #{tpu_custom_call.1} parent=1 // pred_check_branch
      %65 = sbr.rel (0) target = $region45
    $region44: #{tpu_custom_call.1} parent=1 // pred_region
      _
    $region45: #{tpu_custom_call.1} parent=1 // pred_fallthru
      _
    // Predicated region
    $region46: #{tpu_custom_call.1} parent=1 // pred_check
      _
    $region47: #{tpu_custom_call.1} parent=1 // pred_check_branch
      %67 = sbr.rel (0) target = $region49
    $region48: #{tpu_custom_call.1} parent=1 // pred_region
      %68 = dma.done [#allocation3], 128
    $region49: #{tpu_custom_call.1} parent=1 // pred_fallthru
      _
    // Predicated region
    $region50: #{tpu_custom_call.1} parent=1 // pred_check
      _
    $region51: #{tpu_custom_call.1} parent=1 // pred_check_branch
      %70 = sbr.rel (0) target = $region53
    $region52: #{tpu_custom_call.1} parent=1 // pred_region
      %71 = dma.done [#allocation5], 16
    $region53: #{tpu_custom_call.1} parent=1 // pred_fallthru
      _
    // Predicated region
    $region54: #{tpu_custom_call.1} parent=1 // pred_check
      _
    $region55: #{tpu_custom_call.1} parent=1 // pred_check_branch
      %73 = sbr.rel (0) target = $region57
    $region56: #{tpu_custom_call.1} parent=1 // pred_region
      %74 = dma.done [#allocation5], 16
    $region57: #{tpu_custom_call.1} parent=1 // pred_fallthru
      _
    %v76 = vld [vmem:[%s0] sm:$0xff]
    %v77 = vpack.c.bf16 %v76, %v76
    %v78 = vld [vmem:[#allocation2] sm:$0xf]
    %v79 = vld [vmem:[#allocation2 + $0x4] sm:$0xf]
    %v80 = vld [vmem:[%s2] sm:$0x1]
    %v82 = vlaneseq
    %v83 = vshrl.u32 %v82, 7
    %v84 = vsub.s32 0, %v83
    %v85 = vrot.slane %v80, %v84
    %v89 = vunpack.c.l.b16 %v78
    %v90 = vunpack.c.l.b16 %v79
    %v91 = vpack.c.b16 %v90, %v89
    %vm93 = vcmask 130048
    %v95 = vsel %vm93, %v77, 0
    %97 = vmatprep.subr.bf16.mxu0 0
    %98 = vmatpush1.bf16.msra.mxu0 0
    %99 = vmatprep.subr.bf16.mxu0 0
    %100 = vmatpush1.bf16.msra.mxu0 0
    %101 = vmatprep.subr.bf16.mxu0 0
    %102 = vmatpush1.bf16.msra.mxu0 0
    %103 = vmatprep.subr.bf16.mxu0 0
    %104 = vmatpush1.bf16.msra.mxu0 0
    %105 = vmatprep.subr.bf16.mxu0 0
    %106 = vmatpush1.bf16.msra.mxu0 0
    %107 = vmatprep.subr.bf16.mxu0 0
    %108 = vmatpush1.bf16.msra.mxu0 0
    %109 = vmatprep.subr.bf16.mxu0 0
    %110 = vmatpush1.bf16.msra.mxu0 0
    %111 = vmatprep.subr.bf16.mxu0 0
    %112 = vmatpush1.bf16.msra.mxu0 %v91
    %113 = vmatprep.subr.bf16.mxu0 0
    %114 = vmatpush2.bf16.msra.mxu0 0
    %115 = vmatprep.subr.bf16.mxu0 0
    %116 = vmatpush2.bf16.msra.mxu0 0
    %117 = vmatprep.subr.bf16.mxu0 0
    %118 = vmatpush2.bf16.msra.mxu0 0
    %119 = vmatprep.subr.bf16.mxu0 0
    %120 = vmatpush2.bf16.msra.mxu0 0
    %121 = vmatprep.subr.bf16.mxu0 0
    %122 = vmatpush2.bf16.msra.mxu0 0
    %123 = vmatprep.subr.bf16.mxu0 0
    %124 = vmatpush2.bf16.msra.mxu0 0
    %125 = vmatprep.subr.bf16.mxu0 0
    %126 = vmatpush2.bf16.msra.mxu0 0
    %127 = vmatprep.subr.bf16.mxu0 0
    %128 = vmatpush2.bf16.msra.mxu0 0
    %129 = vmatprep.mubr.bf16.mxu0 0
    %130 = vmatmul.mubr.bf16.gmra.mxu0 %v95
    %v131 = vpop.f32.mrf.mxu0
    %v132 = vadd.f32 %v85, %v131
    %v133 = vpop.f32.mrf.mxu0
    %v134 = vpop.f32.mrf.mxu0
    %v135 = vpop.f32.mrf.mxu0
    %136 = vdwg.mxu0
    %v137 = vmax.f32 %v132, 0.0
    %v138 = vld [vmem:[%s3] sm:$0x1]
    %v140 = vlaneseq
    %v141 = vshrl.u32 %v140, 7
    %v142 = vsub.s32 0, %v141
    %v143 = vrot.slane %v138, %v142
    %v145 = vmul.f32 %v137, %v143
    %v146 = vld [vmem:[#allocation4] sm:$0x1]
    %v148 = vlaneseq
    %v149 = vshrl.u32 %v148, 7
    %v150 = vsub.s32 0, %v149
    %v151 = vrot.slane %v146, %v150
    %v153 = vadd.f32 %v145, %v151
    %v154 = vpack.c.bf16 %v153, %v153
    %v155 = vld [vmem:[%s5] sm:$0xf]
    %v156 = vld [vmem:[%s5 + $0x4] sm:$0xf]
    %v157 = vld [vmem:[%s5 + $0x8] sm:$0xf]
    %v158 = vld [vmem:[%s5 + $0xc] sm:$0xf]
    %v159 = vld [vmem:[%s5 + $0x10] sm:$0xf]
    %v160 = vld [vmem:[%s5 + $0x14] sm:$0xf]
    %v161 = vld [vmem:[%s5 + $0x18] sm:$0xf]
    %v162 = vld [vmem:[%s5 + $0x1c] sm:$0xf]
    %v163 = vld [vmem:[%s5 + $0x20] sm:$0xf]
    %v164 = vld [vmem:[%s5 + $0x24] sm:$0xf]
    %v165 = vld [vmem:[%s5 + $0x28] sm:$0xf]
    %v166 = vld [vmem:[%s5 + $0x2c] sm:$0xf]
    %v167 = vld [vmem:[%s5 + $0x30] sm:$0xf]
    %v168 = vld [vmem:[%s5 + $0x34] sm:$0xf]
    %v169 = vld [vmem:[%s5 + $0x38] sm:$0xf]
    %v170 = vld [vmem:[%s5 + $0x3c] sm:$0xf]
    %v171 = vld [vmem:[#allocation6] sm:$0x1]
    %v173 = vlaneseq
    %v174 = vshrl.u32 %v173, 7
    %v175 = vsub.s32 0, %v174
    %v176 = vrot.slane %v171, %v175
    %v194 = vunpack.c.l.b16 %v155
    %v195 = vunpack.c.l.b16 %v156
    %v196 = vunpack.c.l.b16 %v157
    %v197 = vunpack.c.l.b16 %v158
    %v198 = vunpack.c.l.b16 %v159
    %v199 = vunpack.c.l.b16 %v160
    %v200 = vunpack.c.l.b16 %v161
    %v201 = vunpack.c.l.b16 %v162
    %v202 = vunpack.c.l.b16 %v163
    %v203 = vunpack.c.l.b16 %v164
    %v204 = vunpack.c.l.b16 %v165
    %v205 = vunpack.c.l.b16 %v166
    %v206 = vunpack.c.l.b16 %v167
    %v207 = vunpack.c.l.b16 %v168
    %v208 = vunpack.c.l.b16 %v169
    %v209 = vunpack.c.l.b16 %v170
    %v210 = vpack.c.b16 %v195, %v194
    %v211 = vpack.c.b16 %v197, %v196
    %v212 = vpack.c.b16 %v199, %v198
    %v213 = vpack.c.b16 %v201, %v200
    %v214 = vpack.c.b16 %v203, %v202
    %v215 = vpack.c.b16 %v205, %v204
    %v216 = vpack.c.b16 %v207, %v206
    %v217 = vpack.c.b16 %v209, %v208
    %226 = vmatprep.subr.bf16.mxu0 0
    %227 = vmatpush1.bf16.msra.mxu0 %v217
    %228 = vmatprep.subr.bf16.mxu0 0
    %229 = vmatpush1.bf16.msra.mxu0 %v216
    %230 = vmatprep.subr.bf16.mxu0 0
    %231 = vmatpush1.bf16.msra.mxu0 %v215
    %232 = vmatprep.subr.bf16.mxu0 0
    %233 = vmatpush1.bf16.msra.mxu0 %v214
    %234 = vmatprep.subr.bf16.mxu0 0
    %235 = vmatpush1.bf16.msra.mxu0 %v213
    %236 = vmatprep.subr.bf16.mxu0 0
    %237 = vmatpush1.bf16.msra.mxu0 %v212
    %238 = vmatprep.subr.bf16.mxu0 0
    %239 = vmatpush1.bf16.msra.mxu0 %v211
    %240 = vmatprep.subr.bf16.mxu0 0
    %241 = vmatpush1.bf16.msra.mxu0 %v210
    %242 = vmatprep.subr.bf16.mxu0 0
    %243 = vmatpush2.bf16.msra.mxu0 0
    %244 = vmatprep.subr.bf16.mxu0 0
    %245 = vmatpush2.bf16.msra.mxu0 0
    %246 = vmatprep.subr.bf16.mxu0 0
    %247 = vmatpush2.bf16.msra.mxu0 0
    %248 = vmatprep.subr.bf16.mxu0 0
    %249 = vmatpush2.bf16.msra.mxu0 0
    %250 = vmatprep.subr.bf16.mxu0 0
    %251 = vmatpush2.bf16.msra.mxu0 0
    %252 = vmatprep.subr.bf16.mxu0 0
    %253 = vmatpush2.bf16.msra.mxu0 0
    %254 = vmatprep.subr.bf16.mxu0 0
    %255 = vmatpush2.bf16.msra.mxu0 0
    %256 = vmatprep.subr.bf16.mxu0 0
    %257 = vmatpush2.bf16.msra.mxu0 0
    %258 = vmatprep.mubr.bf16.mxu0 0
    %259 = vmatmul.mubr.bf16.gmra.mxu0 %v154
    %v260 = vpop.f32.mrf.mxu0
    %v261 = vadd.f32 %v176, %v260
    %v262 = vpop.f32.mrf.mxu0
    %v263 = vpop.f32.mrf.mxu0
    %v264 = vpop.f32.mrf.mxu0
    %265 = vdwg.mxu0
    %v266 = vmax.f32 %v261, 0.0
    %v267 = vld [vmem:[%s7] sm:$0x1]
    %v269 = vlaneseq
    %v270 = vshrl.u32 %v269, 7
    %v271 = vsub.s32 0, %v270
    %v272 = vrot.slane %v267, %v271
    %v274 = vmul.f32 %v266, %v272
    %v275 = vld [vmem:[%s8] sm:$0x1]
    %v277 = vlaneseq
    %v278 = vshrl.u32 %v277, 7
    %v279 = vsub.s32 0, %v278
    %v280 = vrot.slane %v275, %v279
    %v282 = vadd.f32 %v274, %v280
    %v283 = vpack.c.bf16 %v282, %v282
    %v284 = vld [vmem:[%s9] sm:$0xf]
    %v285 = vld [vmem:[%s9 + $0x4] sm:$0xf]
    %v286 = vld [vmem:[%s9 + $0x8] sm:$0xf]
    %v287 = vld [vmem:[%s9 + $0xc] sm:$0xf]
    %v288 = vld [vmem:[%s9 + $0x10] sm:$0xf]
    %v289 = vld [vmem:[%s9 + $0x14] sm:$0xf]
    %v290 = vld [vmem:[%s9 + $0x18] sm:$0xf]
    %v291 = vld [vmem:[%s9 + $0x1c] sm:$0xf]
    %v292 = vld [vmem:[%s9 + $0x20] sm:$0xf]
    %v293 = vld [vmem:[%s9 + $0x24] sm:$0xf]
    %v294 = vld [vmem:[%s9 + $0x28] sm:$0xf]
    %v295 = vld [vmem:[%s9 + $0x2c] sm:$0xf]
    %v296 = vld [vmem:[%s9 + $0x30] sm:$0xf]
    %v297 = vld [vmem:[%s9 + $0x34] sm:$0xf]
    %v298 = vld [vmem:[%s9 + $0x38] sm:$0xf]
    %v299 = vld [vmem:[%s9 + $0x3c] sm:$0xf]
    %v300 = vld [vmem:[%s10] sm:$0x1]
    %v302 = vlaneseq
    %v303 = vshrl.u32 %v302, 7
    %v304 = vsub.s32 0, %v303
    %v305 = vrot.slane %v300, %v304
    %v323 = vunpack.c.l.b16 %v284
    %v324 = vunpack.c.l.b16 %v285
    %v325 = vunpack.c.l.b16 %v286
    %v326 = vunpack.c.l.b16 %v287
    %v327 = vunpack.c.l.b16 %v288
    %v328 = vunpack.c.l.b16 %v289
    %v329 = vunpack.c.l.b16 %v290
    %v330 = vunpack.c.l.b16 %v291
    %v331 = vunpack.c.l.b16 %v292
    %v332 = vunpack.c.l.b16 %v293
    %v333 = vunpack.c.l.b16 %v294
    %v334 = vunpack.c.l.b16 %v295
    %v335 = vunpack.c.l.b16 %v296
    %v336 = vunpack.c.l.b16 %v297
    %v337 = vunpack.c.l.b16 %v298
    %v338 = vunpack.c.l.b16 %v299
    %v339 = vpack.c.b16 %v324, %v323
    %v340 = vpack.c.b16 %v326, %v325
    %v341 = vpack.c.b16 %v328, %v327
    %v342 = vpack.c.b16 %v330, %v329
    %v343 = vpack.c.b16 %v332, %v331
    %v344 = vpack.c.b16 %v334, %v333
    %v345 = vpack.c.b16 %v336, %v335
    %v346 = vpack.c.b16 %v338, %v337
    %355 = vmatprep.subr.bf16.mxu0 0
    %356 = vmatpush1.bf16.msra.mxu0 %v346
    %357 = vmatprep.subr.bf16.mxu0 0
    %358 = vmatpush1.bf16.msra.mxu0 %v345
    %359 = vmatprep.subr.bf16.mxu0 0
    %360 = vmatpush1.bf16.msra.mxu0 %v344
    %361 = vmatprep.subr.bf16.mxu0 0
    %362 = vmatpush1.bf16.msra.mxu0 %v343
    %363 = vmatprep.subr.bf16.mxu0 0
    %364 = vmatpush1.bf16.msra.mxu0 %v342
    %365 = vmatprep.subr.bf16.mxu0 0
    %366 = vmatpush1.bf16.msra.mxu0 %v341
    %367 = vmatprep.subr.bf16.mxu0 0
    %368 = vmatpush1.bf16.msra.mxu0 %v340
    %369 = vmatprep.subr.bf16.mxu0 0
    %370 = vmatpush1.bf16.msra.mxu0 %v339
    %371 = vmatprep.subr.bf16.mxu0 0
    %372 = vmatpush2.bf16.msra.mxu0 0
    %373 = vmatprep.subr.bf16.mxu0 0
    %374 = vmatpush2.bf16.msra.mxu0 0
    %375 = vmatprep.subr.bf16.mxu0 0
    %376 = vmatpush2.bf16.msra.mxu0 0
    %377 = vmatprep.subr.bf16.mxu0 0
    %378 = vmatpush2.bf16.msra.mxu0 0
    %379 = vmatprep.subr.bf16.mxu0 0
    %380 = vmatpush2.bf16.msra.mxu0 0
    %381 = vmatprep.subr.bf16.mxu0 0
    %382 = vmatpush2.bf16.msra.mxu0 0
    %383 = vmatprep.subr.bf16.mxu0 0
    %384 = vmatpush2.bf16.msra.mxu0 0
    %385 = vmatprep.subr.bf16.mxu0 0
    %386 = vmatpush2.bf16.msra.mxu0 0
    %387 = vmatprep.mubr.bf16.mxu0 0
    %388 = vmatmul.mubr.bf16.gmra.mxu0 %v283
    %v389 = vpop.f32.mrf.mxu0
    %v390 = vadd.f32 %v305, %v389
    %v391 = vpop.f32.mrf.mxu0
    %v392 = vpop.f32.mrf.mxu0
    %v393 = vpop.f32.mrf.mxu0
    %394 = vdwg.mxu0
    %vm395 = vcmask 31744
    %396 = vst.msk [vmem:[%s11] sm:$0xff] %vm395, %v390
    // Predicated region
    $region58: #{tpu_custom_call.1} parent=1 // pred_check
      _
    $region59: #{tpu_custom_call.1} parent=1 // pred_check_branch
      %398 = sbr.rel (0) target = $region61
    $region60: #{tpu_custom_call.1} parent=1 // pred_region
      _
    $region61: #{tpu_custom_call.1} parent=1 // pred_fallthru
      _
    // Predicated region
    $region62: #{tpu_custom_call.1} parent=1 // pred_check
      _
    $region63: #{tpu_custom_call.1} parent=1 // pred_check_branch
      %400 = sbr.rel (0) target = $region65
    $region64: #{tpu_custom_call.1} parent=1 // pred_region
      _
    $region65: #{tpu_custom_call.1} parent=1 // pred_fallthru
      _
    %401 = vsyncpa [#allocation3], 1
    %402 = vsyncpa [#allocation5], 1

</llo_original>
